<compile_context>
chip_gen: v7x
topology: tpu7x:2x2x1
jax: 0.10.0
libtpu: 0.0.40
codegen_flags: <defaults>
</compile_context>

<pallas_src>
import functools

import numpy as np
import jax
import jax.numpy as jnp
from jax.experimental import pallas as pl
from jax.experimental.pallas import tpu as pltpu

# ----------------------------- synthetic SMPL-X sizes (small) -----------------------------
NUM_BETAS = 11                    # SMPLX(num_betas=11)
NUM_JOINTS = 22                   # global_orient + 21 body joints  (rotmat[:, :22])
NUM_VERTS = 128                   # synthetic mesh size (real SMPL-X: 10475)
POSE_FEAT = (NUM_JOINTS - 1) * 9  # 189 pose-blendshape features
NUM_OUT_JOINTS = 24               # regressed output joints
IMG_RES = 256

K_FEAT = NUM_BETAS + POSE_FEAT    # 200 fused blendshape features
K_PAD = 256                       # lane-padded GEMM K; column K_FEAT is the constant-1 bias column
MESH_W = 3 * NUM_VERTS            # 384 (= 3 * 128, lane aligned)
JFK_W = 3 * NUM_JOINTS            # 66
OUT1_W = 512                      # 384 mesh + 66 fk joints + pad -> 4 * 128 lanes
NJPAD = 128                       # lane-padded output-joint axis
CAM_W = 128                       # lane-padded camera scalar row

# SMPL-style kinematic tree for the first 22 joints
PARENTS = np.array([-1, 0, 0, 0, 1, 2, 3, 4, 5, 6, 7, 8,
                    9, 9, 9, 12, 13, 14, 16, 17, 18, 19], dtype=np.int32)


def _tree_levels(parents):
    """Group joints by depth so FK becomes a few batched matmuls instead of a serial chain."""
    par = np.asarray(parents)
    depth = np.zeros(len(par), np.int32)
    for i in range(1, len(par)):
        depth[i] = depth[par[i]] + 1
    levels = []
    for d in range(1, int(depth.max()) + 1):
        idx = np.where(depth == d)[0]
        levels.append((idx, par[idx]))
    return levels


_LEVELS = _tree_levels(PARENTS)   # 7 levels for the 22-joint SMPL-X body tree


# ---------------------------------- Pallas kernels ----------------------------------------
def _blend_kernel(feats_ref, dirs_ref, out_ref):
    """Fused shape+pose blendshapes, FK-joint regression AND bias, as one GEMM.

    feats (BT, 256) @ dirs (256, 512) -> out (BT, 512).  Column K_FEAT of feats is a
    constant 1 so the template/bias row of dirs is added by the same matmul; the 512
    output lanes hold [v_posed x|y|z (3*128), fk-joints x|y|z (3*22), zero pad].
    """
    out_ref[...] = jnp.dot(feats_ref[...], dirs_ref[...],
                           preferred_element_type=jnp.float32)


def _skin_project_kernel(mesh_ref, a_ref, cam_ref, wT_ref, joutT_ref,
                         verts_ref, j3d_ref, j2d_ref, t_scr, v_scr):
    """LBS skinning + output-joint regression + perspective projection for a batch block.

    mesh_ref : (BT, 384)        kernel-1 output, v_posed coords-major [x(128) y(128) z(128)]
    a_ref    : (12*BT, NJ)      per-joint affine rows, sublane order k*BT + b (k = 4c+m)
    cam_ref  : (BT, 128)        [tx, ty, tz, k00, k01, k02, k10, k11, k12, 0 ...]
    wT_ref   : (NJ, V)          skinning weights (transposed)
    joutT_ref: (V, 128)         output-joint regressor, lane-padded with zeros
    t_scr    : (12*BT, V)       fused blended-affine scratch
    v_scr    : (3*BT, V)        stacked skinned-vertex scratch (xyz along sublanes)
    """
    V = wT_ref.shape[1]
    NP = joutT_ref.shape[1]
    BT = mesh_ref.shape[0]

    # (1) ONE GEMM blends all 12 affine rows of the whole batch block against a single
    #     wT weight load: (12*BT, NJ) @ (NJ, V) -> VMEM scratch.
    t_scr[...] = jnp.dot(a_ref[...], wT_ref[...], preferred_element_type=jnp.float32)

    def trow(k):                                   # (BT, V) slab of the fused result
        return t_scr[k * BT:(k + 1) * BT, :]

    px = mesh_ref[:, 0 * V:1 * V]
    py = mesh_ref[:, 1 * V:2 * V]
    pz = mesh_ref[:, 2 * V:3 * V]
    vx = trow(0) * px + trow(1) * py + trow(2) * pz + trow(3)
    vy = trow(4) * px + trow(5) * py + trow(6) * pz + trow(7)
    vz = trow(8) * px + trow(9) * py + trow(10) * pz + trow(11)

    # aligned 128-lane slice stores (unmasked)
    verts_ref[:, 0 * V:1 * V] = vx
    verts_ref[:, 1 * V:2 * V] = vy
    verts_ref[:, 2 * V:3 * V] = vz

    # (2) ONE GEMM for the output-joint regression of all three coords: stack xyz along
    #     sublanes and hit joutT once.
    v_scr[0 * BT:1 * BT, :] = vx
    v_scr[1 * BT:2 * BT, :] = vy
    v_scr[2 * BT:3 * BT, :] = vz
    jall = jnp.dot(v_scr[...], joutT_ref[...], preferred_element_type=jnp.float32)  # (3*BT, 128)
    jx = jall[0 * BT:1 * BT, :]
    jy = jall[1 * BT:2 * BT, :]
    jz = jall[2 * BT:3 * BT, :]
    j3d_ref[:, 0 * NP:1 * NP] = jx
    j3d_ref[:, 1 * NP:2 * NP] = jy
    j3d_ref[:, 2 * NP:3 * NP] = jz

    # (3) perspective projection (cam_t precomputed in the wrapper)
    cam = cam_ref[...]
    tx, ty, tz = cam[:, 0:1], cam[:, 1:2], cam[:, 2:3]
    k00, k01, k02 = cam[:, 3:4], cam[:, 4:5], cam[:, 5:6]
    k10, k11, k12 = cam[:, 6:7], cam[:, 7:8], cam[:, 8:9]
    inv_z = pl.reciprocal(jz + tz, approx=True)
    xn = (jx + tx) * inv_z
    yn = (jy + ty) * inv_z
    j2d_ref[:, 0 * NP:1 * NP] = k00 * xn + k01 * yn + k02
    j2d_ref[:, 1 * NP:2 * NP] = k10 * xn + k11 * yn + k12


# ---------------------------------- plain-JAX glue ------------------------------------------
def aa_to_rotmat(aa):
    angle = jnp.linalg.norm(aa, axis=-1, keepdims=True) + 1e-8
    axis = aa / angle
    x, y, z = axis[..., 0], axis[..., 1], axis[..., 2]
    ang = angle[..., 0]
    c, s = jnp.cos(ang), jnp.sin(ang)
    C = 1.0 - c
    R = jnp.stack([
        c + x * x * C,     x * y * C - z * s, x * z * C + y * s,
        y * x * C + z * s, c + y * y * C,     y * z * C - x * s,
        z * x * C - y * s, z * y * C + x * s, c + z * z * C], axis=-1)
    return R.reshape(aa.shape[:-1] + (3, 3))


def _local_transforms(rot_mats, joints, parents):
    B, J = joints.shape[:2]
    dtype = joints.dtype
    par = np.asarray(parents)
    rel = jnp.concatenate([joints[:, :1], joints[:, 1:] - joints[:, par[1:]]], axis=1)
    top = jnp.concatenate([rot_mats, rel[..., None]], axis=-1)                 # (B, J, 3, 4)
    bottom = jnp.broadcast_to(jnp.array([0., 0., 0., 1.], dtype), (B, J, 1, 4))
    return jnp.concatenate([top, bottom], axis=2)                              # (B, J, 4, 4)


def _skinning_relative(transforms, joints):
    B, J = joints.shape[:2]
    dtype = joints.dtype
    joints_h = jnp.concatenate([joints, jnp.zeros((B, J, 1), dtype)], axis=-1)[..., None]
    init_bone = jnp.matmul(transforms, joints_h)                               # (B, J, 4, 1)
    init_bone = jnp.pad(init_bone, ((0, 0), (0, 0), (0, 0), (3, 0)))
    return transforms - init_bone


def batch_rigid_transform_leveled(rot_mats, joints, parents):
    """SMPL FK processed level-by-level: ~7 batched (B,L,4,4) matmuls instead of 21
    sequential (B,4,4) matmuls. Returns skinning-relative 4x4 transforms (B, J, 4, 4)."""
    tmats = _local_transforms(rot_mats, joints, parents)
    chain = tmats                                     # root already correct at joint 0
    for idx, pidx in _LEVELS:
        parent_T = chain[:, pidx]                     # (B, L, 4, 4)
        chain = chain.at[:, idx].set(jnp.matmul(parent_T, tmats[:, idx]))
    return _skinning_relative(chain, joints)


def batch_rigid_transform_seq(rot_mats, joints, parents):
    """Reference sequential-chain FK (used only by the pure-JAX reference)."""
    J = joints.shape[1]
    par = np.asarray(parents)
    tmats = _local_transforms(rot_mats, joints, parents)
    chain = [tmats[:, 0]]
    for i in range(1, J):
        chain.append(jnp.matmul(chain[int(par[i])], tmats[:, i]))
    transforms = jnp.stack(chain, axis=1)
    return _skinning_relative(transforms, joints)


def init_params(key):
    ks = jax.random.split(key, 6)
    f32 = jnp.float32
    v_template_cm = 0.3 * jax.random.normal(ks[0], (3, NUM_VERTS), f32)
    shapedirs_cm = 0.03 * jax.random.normal(ks[1], (3, NUM_BETAS, NUM_VERTS), f32)
    posedirs_cm = 0.01 * jax.random.normal(ks[2], (3, POSE_FEAT, NUM_VERTS), f32)
    jreg = jax.nn.softmax(jax.random.normal(ks[3], (NUM_JOINTS, NUM_VERTS), f32), axis=-1)
    lbs_w = jax.nn.softmax(2.0 * jax.random.normal(ks[4], (NUM_VERTS, NUM_JOINTS), f32), axis=-1)
    jout = jax.nn.softmax(jax.random.normal(ks[5], (NUM_OUT_JOINTS, NUM_VERTS), f32), axis=-1)
    return dict(
        v_template_cm=v_template_cm,           # (3, V)
        shapedirs_cm=shapedirs_cm,             # (3, NUM_BETAS, V)
        posedirs_cm=posedirs_cm,               # (3, POSE_FEAT, V)
        jregT=jreg.T,                          # (V, NUM_JOINTS)
        lbs_wT=lbs_w.T,                        # (NUM_JOINTS, V)
        joutT=jout.T,                          # (V, NUM_OUT_JOINTS)
    )


def pack_params(base):
    """Pre-layout the SMPL-X constants for the fused, lane-aligned Pallas kernels."""
    f32 = jnp.float32
    hi = jax.lax.Precision.HIGHEST
    vt = base['v_template_cm']                 # (3, V)
    sd = base['shapedirs_cm']                  # (3, NB, V)
    pdir = base['posedirs_cm']                 # (3, PF, V)
    jregT = base['jregT']                      # (V, NJ)

    # blendshape directions, coords-major flattened columns  [x(0..V-1), y(...), z(...)]
    sd_flat = jnp.transpose(sd, (1, 0, 2)).reshape(NUM_BETAS, MESH_W)
    pd_flat = jnp.transpose(pdir, (1, 0, 2)).reshape(POSE_FEAT, MESH_W)
    dirs_mesh = jnp.concatenate([sd_flat, pd_flat], axis=0)                    # (200, 384)

    # joints-from-betas directions: shapedirs folded through the joint regressor
    sd_jnt = jnp.einsum('csv,vj->scj', sd, jregT, precision=hi).reshape(NUM_BETAS, JFK_W)
    dirs_jnt = jnp.concatenate([sd_jnt, jnp.zeros((POSE_FEAT, JFK_W), f32)], axis=0)

    pad_w = OUT1_W - MESH_W - JFK_W
    dirs_all = jnp.concatenate(
        [dirs_mesh, dirs_jnt, jnp.zeros((K_FEAT, pad_w), f32)], axis=1)        # (200, 512)
    bias_all = jnp.concatenate(
        [vt.reshape(1, MESH_W),
         jnp.dot(vt, jregT, precision=hi).reshape(1, JFK_W),
         jnp.zeros((1, pad_w), f32)], axis=1)                                  # (1, 512)

    # K padded to 256; the bias lives in row K_FEAT (paired with a constant-1 feature).
    dirs_pad = jnp.zeros((K_PAD, OUT1_W), f32)
    dirs_pad = dirs_pad.at[:K_FEAT].set(dirs_all)
    dirs_pad = dirs_pad.at[K_FEAT].set(bias_all[0])                            # (256, 512)

    joutT_pad = jnp.pad(base['joutT'], ((0, 0), (0, NJPAD - NUM_OUT_JOINTS)))  # (V, 128)
    return dict(dirs_pad=dirs_pad, lbs_wT=base['lbs_wT'], joutT_pad=joutT_pad)


def _pick_bt(B):
    """Batch-block size: fill the 256-wide v6e/v7x MXU M axis, keep >= 2 grid steps for
    large batches (v7x has 2 TensorCores), and stay a sublane (8) multiple."""
    if B <= 16:
        return B
    bt = (B + 1) // 2
    bt = ((bt + 7) // 8) * 8
    return min(256, bt)


# ------------------------------- SMPLXCamHead forward ---------------------------------------
def smplx_cam_head_forward(packed, rotmat, shape, cam, cam_intrinsics,
                           bbox_scale, bbox_center, img_w, img_h):
    f32 = jnp.float32
    B = shape.shape[0]
    BT = _pick_bt(B)
    G = pl.cdiv(B, BT)
    grid = (G,)
    eye = jnp.eye(3, dtype=f32)

    pose_feat = (rotmat[:, 1:NUM_JOINTS].astype(f32) - eye).reshape(B, POSE_FEAT)
    feats = jnp.concatenate(
        [shape.astype(f32), pose_feat,
         jnp.ones((B, 1), f32),                             # constant-1 bias column
         jnp.zeros((B, K_PAD - K_FEAT - 1), f32)], axis=1)  # (B, 256)

    dirs_pad = packed['dirs_pad']
    wT, joutT_pad = packed['lbs_wT'], packed['joutT_pad']

    ce1 = pl.CostEstimate(
        flops=2 * B * K_PAD * OUT1_W,
        transcendentals=0,
        bytes_accessed=4 * (B * K_PAD + K_PAD * OUT1_W + B * OUT1_W))

    # kernel 1: fused blendshapes + FK-joint regression + bias (single GEMM per batch block)
    out1 = pl.pallas_call(
        _blend_kernel,
        grid=grid,
        in_specs=[pl.BlockSpec((BT, K_PAD), lambda i: (i, 0)),
                  pl.BlockSpec((K_PAD, OUT1_W), lambda i: (0, 0))],
        out_specs=pl.BlockSpec((BT, OUT1_W), lambda i: (i, 0)),
        out_shape=jax.ShapeDtypeStruct((B, OUT1_W), f32),
        compiler_params=pltpu.CompilerParams(dimension_semantics=("parallel",)),
        cost_estimate=ce1,
    )(feats, dirs_pad)

    # forward kinematics (level-parallel batched 4x4 matmuls) in plain JAX glue
    joints_fk = out1[:, MESH_W:MESH_W + JFK_W].reshape(B, 3, NUM_JOINTS)
    joints_fk = jnp.transpose(joints_fk, (0, 2, 1))                            # (B, NJ, 3)
    A_rel = batch_rigid_transform_leveled(rotmat[:, :NUM_JOINTS].astype(f32),
                                          joints_fk, PARENTS)
    # only the top 3 rows of each 4x4 are needed; flatten k = 4*c + m and pre-block so
    # kernel 2 can run ONE (12*BT, NJ) GEMM per batch block.
    A12 = jnp.transpose(A_rel[:, :, :3, :].reshape(B, NUM_JOINTS, 12), (2, 0, 1))  # (12, B, NJ)
    Bpad = G * BT
    if Bpad != B:
        A12 = jnp.pad(A12, ((0, 0), (0, Bpad - B), (0, 0)))
    A_blk = A12.reshape(12, G, BT, NUM_JOINTS)
    A_blk = jnp.transpose(A_blk, (1, 0, 2, 3)).reshape(G, 12 * BT, NUM_JOINTS)  # (G, 12*BT, NJ)

    # PARE-cam -> full-image camera translation (per-batch scalar algebra, stays in XLA)
    K = cam_intrinsics.astype(f32)
    s_, tx0, ty0 = cam[:, 0], cam[:, 1], cam[:, 2]
    bbox_h = bbox_scale * 200.0
    focal = K[:, 0, 0]
    tz = 2.0 * focal / (bbox_h * s_)
    cx = 2.0 * (bbox_center[:, 0] - img_w * 0.5) / (s_ * bbox_h)
    cy = 2.0 * (bbox_center[:, 1] - img_h * 0.5) / (s_ * bbox_h)
    cam_t = jnp.stack([tx0 + cx, ty0 + cy, tz], axis=-1).astype(f32)           # (B, 3)
    cam_scalars = jnp.concatenate([cam_t, K[:, :2, :].reshape(B, 6)], axis=1)  # (B, 9)
    camk = jnp.pad(cam_scalars, ((0, 0), (0, CAM_W - 9)))                      # (B, 128) dense

    ce2 = pl.CostEstimate(
        flops=2 * B * (12 * NUM_JOINTS * NUM_VERTS + 3 * NUM_VERTS * NJPAD)
              + 30 * B * NUM_VERTS + 12 * B * NJPAD,
        transcendentals=B * NJPAD,
        bytes_accessed=4 * (B * MESH_W + 12 * B * NUM_JOINTS + B * CAM_W
                            + NUM_JOINTS * NUM_VERTS + NUM_VERTS * NJPAD
                            + B * (MESH_W + 5 * NJPAD)))

    # kernel 2: fused LBS skinning + joint regression + perspective projection
    verts_f, j3d_f, j2d_f = pl.pallas_call(
        _skin_project_kernel,
        grid=grid,
        in_specs=[pl.BlockSpec((BT, MESH_W), lambda i: (i, 0)),        # only the mesh lanes
                  pl.BlockSpec((None, 12 * BT, NUM_JOINTS), lambda i: (i, 0, 0)),
                  pl.BlockSpec((BT, CAM_W), lambda i: (i, 0)),
                  pl.BlockSpec((NUM_JOINTS, NUM_VERTS), lambda i: (0, 0)),
                  pl.BlockSpec((NUM_VERTS, NJPAD), lambda i: (0, 0))],
        out_specs=[pl.BlockSpec((BT, MESH_W), lambda i: (i, 0)),
                   pl.BlockSpec((BT, 3 * NJPAD), lambda i: (i, 0)),
                   pl.BlockSpec((BT, 2 * NJPAD), lambda i: (i, 0))],
        out_shape=[jax.ShapeDtypeStruct((B, MESH_W), f32),
                   jax.ShapeDtypeStruct((B, 3 * NJPAD), f32),
                   jax.ShapeDtypeStruct((B, 2 * NJPAD), f32)],
        scratch_shapes=[pltpu.VMEM((12 * BT, NUM_VERTS), jnp.float32),
                        pltpu.VMEM((3 * BT, NUM_VERTS), jnp.float32)],
        compiler_params=pltpu.CompilerParams(dimension_semantics=("parallel",)),
        cost_estimate=ce2,
    )(out1, A_blk, camk, wT, joutT_pad)

    verts = jnp.transpose(verts_f.reshape(B, 3, NUM_VERTS), (0, 2, 1))          # (B, V, 3)
    j3d = jnp.transpose(j3d_f.reshape(B, 3, NJPAD)[:, :, :NUM_OUT_JOINTS], (0, 2, 1))
    j2d = jnp.transpose(j2d_f.reshape(B, 2, NJPAD)[:, :, :NUM_OUT_JOINTS], (0, 2, 1))
    return {
        'vertices': verts,            # (B, V, 3)
        'joints3d': j3d,              # (B, NJ_OUT, 3)
        'joints2d': j2d,              # (B, NJ_OUT, 2)
        'pred_cam_t': cam_t,          # (B, 3)
    }


# ------------------------------------ pure-JAX reference ------------------------------------
def reference_forward(params, rotmat, shape, K, cam, bbox_scale, bbox_center, img_w, img_h):
    f32 = jnp.float32
    B = shape.shape[0]
    vt, sd, pdir = params['v_template_cm'], params['shapedirs_cm'], params['posedirs_cm']
    jregT, wT, joutT = params['jregT'], params['lbs_wT'], params['joutT']
    eye = jnp.eye(3, dtype=f32)

    v_shaped_cm = vt[None] + jnp.einsum('bs,csv->bcv', shape, sd)
    pose_feat = (rotmat[:, 1:NUM_JOINTS] - eye).reshape(B, POSE_FEAT)
    v_posed_cm = v_shaped_cm + jnp.einsum('bp,cpv->bcv', pose_feat, pdir)
    joints_fk = jnp.einsum('bcv,vj->bjc', v_shaped_cm, jregT)
    A = batch_rigid_transform_seq(rotmat[:, :NUM_JOINTS], joints_fk, PARENTS)
    W = wT.T
    T = jnp.einsum('vj,bjmn->bvmn', W, A)
    v_posed = jnp.transpose(v_posed_cm, (0, 2, 1))
    v_h = jnp.concatenate([v_posed, jnp.ones((B, NUM_VERTS, 1), f32)], axis=-1)
    verts = jnp.einsum('bvmn,bvn->bvm', T, v_h)[..., :3]
    j3d = jnp.einsum('vj,bvc->bjc', joutT, verts)

    s_, tx0, ty0 = cam[:, 0], cam[:, 1], cam[:, 2]
    bbox_h = bbox_scale * 200.0
    focal = K[:, 0, 0]
    tz = 2.0 * focal / (bbox_h * s_)
    cx = 2.0 * (bbox_center[:, 0] - img_w / 2.0) / (s_ * bbox_h)
    cy = 2.0 * (bbox_center[:, 1] - img_h / 2.0) / (s_ * bbox_h)
    cam_t = jnp.stack([tx0 + cx, ty0 + cy, tz], axis=-1)
    pts = j3d + cam_t[:, None, :]
    pts_n = pts / pts[..., 2:3]
    proj = jnp.einsum('bij,bkj->bki', K, pts_n)
    return {'vertices': verts, 'joints3d': j3d, 'joints2d': proj[..., :2], 'pred_cam_t': cam_t}


# ------------------------------------------ main ---------------------------------------------
if __name__ == "__main__":
    key = jax.random.PRNGKey(0)
    kp, kd = jax.random.split(key)
    params = init_params(kp)
    packed = pack_params(params)

    B = 2
    ks = jax.random.split(kd, 7)
    aa = 0.3 * jax.random.normal(ks[0], (B, NUM_JOINTS, 3), jnp.float32)
    rotmat = aa_to_rotmat(aa)                                                  # (B, 22, 3, 3)
    shape = 0.5 * jax.random.normal(ks[1], (B, NUM_BETAS), jnp.float32)
    cam = jnp.stack([1.0 + 0.1 * jax.random.normal(ks[2], (B,)),
                     0.1 * jax.random.normal(ks[3], (B,)),
                     0.1 * jax.random.normal(ks[4], (B,))], axis=-1).astype(jnp.float32)
    focal = 600.0
    K = jnp.broadcast_to(jnp.array([[focal, 0.0, IMG_RES / 2.0],
                                    [0.0, focal, IMG_RES / 2.0],
                                    [0.0, 0.0, 1.0]], jnp.float32), (B, 3, 3))
    bbox_scale = 1.1 + 0.1 * jax.random.uniform(ks[5], (B,), jnp.float32)
    bbox_center = IMG_RES / 2.0 + 20.0 * jax.random.normal(ks[6], (B, 2), jnp.float32)
    img_w = jnp.full((B,), float(IMG_RES), jnp.float32)
    img_h = jnp.full((B,), float(IMG_RES), jnp.float32)

    fwd = jax.jit(functools.partial(smplx_cam_head_forward, packed))
    out = fwd(rotmat, shape, cam, K, bbox_scale, bbox_center, img_w, img_h)
    out = jax.tree_util.tree_map(jax.block_until_ready, out)

    ref = reference_forward(params, rotmat, shape, K, cam, bbox_scale, bbox_center, img_w, img_h)
    for k in ('vertices', 'joints3d', 'joints2d', 'pred_cam_t'):
        np.testing.assert_allclose(np.asarray(out[k]), np.asarray(ref[k]), rtol=2e-2, atol=2e-2)

    print("KERNEL_OK")
</pallas_src>

<mosaic_0001>
module attributes {stable_mosaic.version = 11 : i64} {
  func.func @_blend_kernel(%arg0: i32, %arg1: memref<2x256xf32, #tpu.memory_space<vmem>>, %arg2: memref<256x512xf32, #tpu.memory_space<vmem>>, %arg3: memref<2x512xf32, #tpu.memory_space<vmem>>) attributes {dimension_semantics = [#tpu.dimension_semantics<parallel>], iteration_bounds = array<i64: 1>, scalar_prefetch = 0 : i64, scratch_operands = 0 : i64, tpu.core_type = #tpu.core_type<tc>, window_params = [{transform_indices = @transform_0, window_bounds = array<i64: 2, 256>}, {pipeline_mode = #tpu.pipeline_mode<synchronous>, transform_indices = @transform_1, window_bounds = array<i64: 256, 512>}, {transform_indices = @transform_2, window_bounds = array<i64: 2, 512>}]} {
    %c0 = arith.constant 0 : index
    %c0_0 = arith.constant 0 : index
    %0 = vector.load %arg1[%c0, %c0_0] : memref<2x256xf32, #tpu.memory_space<vmem>>, vector<2x256xf32>
    %c0_1 = arith.constant 0 : index
    %c0_2 = arith.constant 0 : index
    %1 = vector.load %arg2[%c0_1, %c0_2] : memref<256x512xf32, #tpu.memory_space<vmem>>, vector<256x512xf32>
    %cst = arith.constant dense<0.000000e+00> : vector<2x512xf32>
    %2 = tpu.matmul %0, %1, %cst {dimension_numbers = #tpu.dot_dimension_numbers<[1], [0], [0], [1], [0, 0, 1, 1], [], []>} : vector<2x256xf32>, vector<256x512xf32>, vector<2x512xf32> -> vector<2x512xf32>
    %c0_3 = arith.constant 0 : index
    %c0_4 = arith.constant 0 : index
    %3 = vector.load %arg3[%c0_3, %c0_4] : memref<2x512xf32, #tpu.memory_space<vmem>>, vector<2x512xf32>
    tpu.vector_store %arg3[%c0_3, %c0_4], %2 {strides = array<i32>} : memref<2x512xf32, #tpu.memory_space<vmem>>, vector<2x512xf32>,
    return
  }
  func.func @transform_0(%arg0: i32) -> (i32, i32) {
    %c0_i32 = arith.constant 0 : i32
    %c0_i32_0 = arith.constant 0 : i32
    return %arg0, %c0_i32 : i32, i32
  }
  func.func @transform_1(%arg0: i32) -> (i32, i32) {
    %c0_i32 = arith.constant 0 : i32
    %c0_i32_0 = arith.constant 0 : i32
    %c0_i32_1 = arith.constant 0 : i32
    return %c0_i32, %c0_i32_0 : i32, i32
  }
  func.func @transform_2(%arg0: i32) -> (i32, i32) {
    %c0_i32 = arith.constant 0 : i32
    %c0_i32_0 = arith.constant 0 : i32
    return %arg0, %c0_i32 : i32, i32
  }
}

module attributes {stable_mosaic.version = 11 : i64} {
  func.func @_skin_project_kernel(%arg0: i32, %arg1: memref<2x384xf32, #tpu.memory_space<vmem>>, %arg2: memref<1x24x22xf32, #tpu.memory_space<vmem>>, %arg3: memref<2x128xf32, #tpu.memory_space<vmem>>, %arg4: memref<22x128xf32, #tpu.memory_space<vmem>>, %arg5: memref<128x128xf32, #tpu.memory_space<vmem>>, %arg6: memref<2x384xf32, #tpu.memory_space<vmem>>, %arg7: memref<2x384xf32, #tpu.memory_space<vmem>>, %arg8: memref<2x256xf32, #tpu.memory_space<vmem>>, %arg9: memref<24x128xf32, #tpu.memory_space<vmem>>, %arg10: memref<6x128xf32, #tpu.memory_space<vmem>>) attributes {dimension_semantics = [#tpu.dimension_semantics<parallel>], iteration_bounds = array<i64: 1>, scalar_prefetch = 0 : i64, scratch_operands = 2 : i64, tpu.core_type = #tpu.core_type<tc>, window_params = [{transform_indices = @transform_0, window_bounds = array<i64: 2, 384>}, {transform_indices = @transform_1, window_bounds = array<i64: 1, 24, 22>}, {transform_indices = @transform_2, window_bounds = array<i64: 2, 128>}, {pipeline_mode = #tpu.pipeline_mode<synchronous>, transform_indices = @transform_3, window_bounds = array<i64: 22, 128>}, {pipeline_mode = #tpu.pipeline_mode<synchronous>, transform_indices = @transform_4, window_bounds = array<i64: 128, 128>}, {transform_indices = @transform_5, window_bounds = array<i64: 2, 384>}, {transform_indices = @transform_6, window_bounds = array<i64: 2, 384>}, {transform_indices = @transform_7, window_bounds = array<i64: 2, 256>}]} {
    %c0 = arith.constant 0 : index
    %c0_0 = arith.constant 0 : index
    %c0_1 = arith.constant 0 : index
    %0 = vector.load %arg2[%c0, %c0_0, %c0_1] : memref<1x24x22xf32, #tpu.memory_space<vmem>>, vector<1x24x22xf32>
    %1 = vector.shape_cast %0 : vector<1x24x22xf32> to vector<24x22xf32>
    %c0_2 = arith.constant 0 : index
    %c0_3 = arith.constant 0 : index
    %2 = vector.load %arg4[%c0_2, %c0_3] : memref<22x128xf32, #tpu.memory_space<vmem>>, vector<22x128xf32>
    %cst = arith.constant dense<0.000000e+00> : vector<24x128xf32>
    %3 = tpu.matmul %1, %2, %cst {dimension_numbers = #tpu.dot_dimension_numbers<[1], [0], [0], [1], [0, 0, 1, 1], [], []>} : vector<24x22xf32>, vector<22x128xf32>, vector<24x128xf32> -> vector<24x128xf32>
    %c0_4 = arith.constant 0 : index
    %c0_5 = arith.constant 0 : index
    %4 = vector.load %arg9[%c0_4, %c0_5] : memref<24x128xf32, #tpu.memory_space<vmem>>, vector<24x128xf32>
    tpu.vector_store %arg9[%c0_4, %c0_5], %3 {strides = array<i32>} : memref<24x128xf32, #tpu.memory_space<vmem>>, vector<24x128xf32>,
    %c0_6 = arith.constant 0 : index
    %c0_7 = arith.constant 0 : index
    %5 = vector.load %arg1[%c0_6, %c0_7] : memref<2x384xf32, #tpu.memory_space<vmem>>, vector<2x128xf32>
    %c0_8 = arith.constant 0 : index
    %c128 = arith.constant 128 : index
    %6 = vector.load %arg1[%c0_8, %c128] : memref<2x384xf32, #tpu.memory_space<vmem>>, vector<2x128xf32>
    %c0_9 = arith.constant 0 : index
    %c256 = arith.constant 256 : index
    %7 = vector.load %arg1[%c0_9, %c256] : memref<2x384xf32, #tpu.memory_space<vmem>>, vector<2x128xf32>
    %c0_10 = arith.constant 0 : index
    %c0_11 = arith.constant 0 : index
    %8 = vector.load %arg9[%c0_10, %c0_11] : memref<24x128xf32, #tpu.memory_space<vmem>>, vector<2x128xf32>
    %9 = arith.mulf %8, %5 : vector<2x128xf32>
    %c2 = arith.constant 2 : index
    %c0_12 = arith.constant 0 : index
    %10 = vector.load %arg9[%c2, %c0_12] : memref<24x128xf32, #tpu.memory_space<vmem>>, vector<2x128xf32>
    %11 = arith.mulf %10, %6 : vector<2x128xf32>
    %12 = arith.addf %9, %11 : vector<2x128xf32>
    %c4 = arith.constant 4 : index
    %c0_13 = arith.constant 0 : index
    %13 = vector.load %arg9[%c4, %c0_13] : memref<24x128xf32, #tpu.memory_space<vmem>>, vector<2x128xf32>
    %14 = arith.mulf %13, %7 : vector<2x128xf32>
    %15 = arith.addf %12, %14 : vector<2x128xf32>
    %c6 = arith.constant 6 : index
    %c0_14 = arith.constant 0 : index
    %16 = vector.load %arg9[%c6, %c0_14] : memref<24x128xf32, #tpu.memory_space<vmem>>, vector<2x128xf32>
    %17 = arith.addf %15, %16 : vector<2x128xf32>
    %c8 = arith.constant 8 : index
    %c0_15 = arith.constant 0 : index
    %18 = vector.load %arg9[%c8, %c0_15] : memref<24x128xf32, #tpu.memory_space<vmem>>, vector<2x128xf32>
    %19 = arith.mulf %18, %5 : vector<2x128xf32>
    %c10 = arith.constant 10 : index
    %c0_16 = arith.constant 0 : index
    %20 = vector.load %arg9[%c10, %c0_16] : memref<24x128xf32, #tpu.memory_space<vmem>>, vector<2x128xf32>
    %21 = arith.mulf %20, %6 : vector<2x128xf32>
    %22 = arith.addf %19, %21 : vector<2x128xf32>
    %c12 = arith.constant 12 : index
    %c0_17 = arith.constant 0 : index
    %23 = vector.load %arg9[%c12, %c0_17] : memref<24x128xf32, #tpu.memory_space<vmem>>, vector<2x128xf32>
    %24 = arith.mulf %23, %7 : vector<2x128xf32>
    %25 = arith.addf %22, %24 : vector<2x128xf32>
    %c14 = arith.constant 14 : index
    %c0_18 = arith.constant 0 : index
    %26 = vector.load %arg9[%c14, %c0_18] : memref<24x128xf32, #tpu.memory_space<vmem>>, vector<2x128xf32>
    %27 = arith.addf %25, %26 : vector<2x128xf32>
    %c16 = arith.constant 16 : index
    %c0_19 = arith.constant 0 : index
    %28 = vector.load %arg9[%c16, %c0_19] : memref<24x128xf32, #tpu.memory_space<vmem>>, vector<2x128xf32>
    %29 = arith.mulf %28, %5 : vector<2x128xf32>
    %c18 = arith.constant 18 : index
    %c0_20 = arith.constant 0 : index
    %30 = vector.load %arg9[%c18, %c0_20] : memref<24x128xf32, #tpu.memory_space<vmem>>, vector<2x128xf32>
    %31 = arith.mulf %30, %6 : vector<2x128xf32>
    %32 = arith.addf %29, %31 : vector<2x128xf32>
    %c20 = arith.constant 20 : index
    %c0_21 = arith.constant 0 : index
    %33 = vector.load %arg9[%c20, %c0_21] : memref<24x128xf32, #tpu.memory_space<vmem>>, vector<2x128xf32>
    %34 = arith.mulf %33, %7 : vector<2x128xf32>
    %35 = arith.addf %32, %34 : vector<2x128xf32>
    %c22 = arith.constant 22 : index
    %c0_22 = arith.constant 0 : index
    %36 = vector.load %arg9[%c22, %c0_22] : memref<24x128xf32, #tpu.memory_space<vmem>>, vector<2x128xf32>
    %37 = arith.addf %35, %36 : vector<2x128xf32>
    %c0_23 = arith.constant 0 : index
    %c0_24 = arith.constant 0 : index
    %38 = vector.load %arg6[%c0_23, %c0_24] : memref<2x384xf32, #tpu.memory_space<vmem>>, vector<2x128xf32>
    tpu.vector_store %arg6[%c0_23, %c0_24], %17 {strides = array<i32>} : memref<2x384xf32, #tpu.memory_space<vmem>>, vector<2x128xf32>,
    %c0_25 = arith.constant 0 : index
    %c128_26 = arith.constant 128 : index
    %39 = vector.load %arg6[%c0_25, %c128_26] : memref<2x384xf32, #tpu.memory_space<vmem>>, vector<2x128xf32>
    tpu.vector_store %arg6[%c0_25, %c128_26], %27 {strides = array<i32>} : memref<2x384xf32, #tpu.memory_space<vmem>>, vector<2x128xf32>,
    %c0_27 = arith.constant 0 : index
    %c256_28 = arith.constant 256 : index
    %40 = vector.load %arg6[%c0_27, %c256_28] : memref<2x384xf32, #tpu.memory_space<vmem>>, vector<2x128xf32>
    tpu.vector_store %arg6[%c0_27, %c256_28], %37 {strides = array<i32>} : memref<2x384xf32, #tpu.memory_space<vmem>>, vector<2x128xf32>,
    %c0_29 = arith.constant 0 : index
    %c0_30 = arith.constant 0 : index
    %41 = vector.load %arg10[%c0_29, %c0_30] : memref<6x128xf32, #tpu.memory_space<vmem>>, vector<2x128xf32>
    tpu.vector_store %arg10[%c0_29, %c0_30], %17 {strides = array<i32>} : memref<6x128xf32, #tpu.memory_space<vmem>>, vector<2x128xf32>,
    %c2_31 = arith.constant 2 : index
    %c0_32 = arith.constant 0 : index
    %42 = vector.load %arg10[%c2_31, %c0_32] : memref<6x128xf32, #tpu.memory_space<vmem>>, vector<2x128xf32>
    tpu.vector_store %arg10[%c2_31, %c0_32], %27 {strides = array<i32>} : memref<6x128xf32, #tpu.memory_space<vmem>>, vector<2x128xf32>,
    %c4_33 = arith.constant 4 : index
    %c0_34 = arith.constant 0 : index
    %43 = vector.load %arg10[%c4_33, %c0_34] : memref<6x128xf32, #tpu.memory_space<vmem>>, vector<2x128xf32>
    tpu.vector_store %arg10[%c4_33, %c0_34], %37 {strides = array<i32>} : memref<6x128xf32, #tpu.memory_space<vmem>>, vector<2x128xf32>,
    %c0_35 = arith.constant 0 : index
    %c0_36 = arith.constant 0 : index
    %44 = vector.load %arg10[%c0_35, %c0_36] : memref<6x128xf32, #tpu.memory_space<vmem>>, vector<6x128xf32>
    %c0_37 = arith.constant 0 : index
    %c0_38 = arith.constant 0 : index
    %45 = vector.load %arg5[%c0_37, %c0_38] : memref<128x128xf32, #tpu.memory_space<vmem>>, vector<128x128xf32>
    %cst_39 = arith.constant dense<0.000000e+00> : vector<6x128xf32>
    %46 = tpu.matmul %44, %45, %cst_39 {dimension_numbers = #tpu.dot_dimension_numbers<[1], [0], [0], [1], [0, 0, 1, 1], [], []>} : vector<6x128xf32>, vector<128x128xf32>, vector<6x128xf32> -> vector<6x128xf32>
    %47 = vector.extract_strided_slice %46 {offsets = [0, 0], sizes = [2, 128], strides = [1, 1]} : vector<6x128xf32> to vector<2x128xf32>
    %48 = vector.extract_strided_slice %46 {offsets = [2, 0], sizes = [2, 128], strides = [1, 1]} : vector<6x128xf32> to vector<2x128xf32>
    %49 = vector.extract_strided_slice %46 {offsets = [4, 0], sizes = [2, 128], strides = [1, 1]} : vector<6x128xf32> to vector<2x128xf32>
    %c0_40 = arith.constant 0 : index
    %c0_41 = arith.constant 0 : index
    %50 = vector.load %arg7[%c0_40, %c0_41] : memref<2x384xf32, #tpu.memory_space<vmem>>, vector<2x128xf32>
    tpu.vector_store %arg7[%c0_40, %c0_41], %47 {strides = array<i32>} : memref<2x384xf32, #tpu.memory_space<vmem>>, vector<2x128xf32>,
    %c0_42 = arith.constant 0 : index
    %c128_43 = arith.constant 128 : index
    %51 = vector.load %arg7[%c0_42, %c128_43] : memref<2x384xf32, #tpu.memory_space<vmem>>, vector<2x128xf32>
    tpu.vector_store %arg7[%c0_42, %c128_43], %48 {strides = array<i32>} : memref<2x384xf32, #tpu.memory_space<vmem>>, vector<2x128xf32>,
    %c0_44 = arith.constant 0 : index
    %c256_45 = arith.constant 256 : index
    %52 = vector.load %arg7[%c0_44, %c256_45] : memref<2x384xf32, #tpu.memory_space<vmem>>, vector<2x128xf32>
    tpu.vector_store %arg7[%c0_44, %c256_45], %49 {strides = array<i32>} : memref<2x384xf32, #tpu.memory_space<vmem>>, vector<2x128xf32>,
    %c0_46 = arith.constant 0 : index
    %c0_47 = arith.constant 0 : index
    %53 = vector.load %arg3[%c0_46, %c0_47] : memref<2x128xf32, #tpu.memory_space<vmem>>, vector<2x128xf32>
    %54 = vector.extract_strided_slice %53 {offsets = [0, 0], sizes = [2, 1], strides = [1, 1]} : vector<2x128xf32> to vector<2x1xf32>
    %55 = vector.extract_strided_slice %53 {offsets = [0, 1], sizes = [2, 1], strides = [1, 1]} : vector<2x128xf32> to vector<2x1xf32>
    %56 = vector.extract_strided_slice %53 {offsets = [0, 2], sizes = [2, 1], strides = [1, 1]} : vector<2x128xf32> to vector<2x1xf32>
    %57 = vector.extract_strided_slice %53 {offsets = [0, 3], sizes = [2, 1], strides = [1, 1]} : vector<2x128xf32> to vector<2x1xf32>
    %58 = vector.extract_strided_slice %53 {offsets = [0, 4], sizes = [2, 1], strides = [1, 1]} : vector<2x128xf32> to vector<2x1xf32>
    %59 = vector.extract_strided_slice %53 {offsets = [0, 5], sizes = [2, 1], strides = [1, 1]} : vector<2x128xf32> to vector<2x1xf32>
    %60 = vector.extract_strided_slice %53 {offsets = [0, 6], sizes = [2, 1], strides = [1, 1]} : vector<2x128xf32> to vector<2x1xf32>
    %61 = vector.extract_strided_slice %53 {offsets = [0, 7], sizes = [2, 1], strides = [1, 1]} : vector<2x128xf32> to vector<2x1xf32>
    %62 = vector.extract_strided_slice %53 {offsets = [0, 8], sizes = [2, 1], strides = [1, 1]} : vector<2x128xf32> to vector<2x1xf32>
    %63 = vector.broadcast %56 : vector<2x1xf32> to vector<2x128xf32>
    %64 = arith.addf %49, %63 : vector<2x128xf32>
    %65 = tpu.reciprocal %64 {approx = true} : vector<2x128xf32> -> vector<2x128xf32>
    %66 = vector.broadcast %54 : vector<2x1xf32> to vector<2x128xf32>
    %67 = arith.addf %47, %66 : vector<2x128xf32>
    %68 = arith.mulf %67, %65 : vector<2x128xf32>
    %69 = vector.broadcast %55 : vector<2x1xf32> to vector<2x128xf32>
    %70 = arith.addf %48, %69 : vector<2x128xf32>
    %71 = arith.mulf %70, %65 : vector<2x128xf32>
    %72 = vector.broadcast %57 : vector<2x1xf32> to vector<2x128xf32>
    %73 = arith.mulf %72, %68 : vector<2x128xf32>
    %74 = vector.broadcast %58 : vector<2x1xf32> to vector<2x128xf32>
    %75 = arith.mulf %74, %71 : vector<2x128xf32>
    %76 = arith.addf %73, %75 : vector<2x128xf32>
    %77 = vector.broadcast %59 : vector<2x1xf32> to vector<2x128xf32>
    %78 = arith.addf %76, %77 : vector<2x128xf32>
    %c0_48 = arith.constant 0 : index
    %c0_49 = arith.constant 0 : index
    %79 = vector.load %arg8[%c0_48, %c0_49] : memref<2x256xf32, #tpu.memory_space<vmem>>, vector<2x128xf32>
    tpu.vector_store %arg8[%c0_48, %c0_49], %78 {strides = array<i32>} : memref<2x256xf32, #tpu.memory_space<vmem>>, vector<2x128xf32>,
    %80 = vector.broadcast %60 : vector<2x1xf32> to vector<2x128xf32>
    %81 = arith.mulf %80, %68 : vector<2x128xf32>
    %82 = vector.broadcast %61 : vector<2x1xf32> to vector<2x128xf32>
    %83 = arith.mulf %82, %71 : vector<2x128xf32>
    %84 = arith.addf %81, %83 : vector<2x128xf32>
    %85 = vector.broadcast %62 : vector<2x1xf32> to vector<2x128xf32>
    %86 = arith.addf %84, %85 : vector<2x128xf32>
    %c0_50 = arith.constant 0 : index
    %c128_51 = arith.constant 128 : index
    %87 = vector.load %arg8[%c0_50, %c128_51] : memref<2x256xf32, #tpu.memory_space<vmem>>, vector<2x128xf32>
    tpu.vector_store %arg8[%c0_50, %c128_51], %86 {strides = array<i32>} : memref<2x256xf32, #tpu.memory_space<vmem>>, vector<2x128xf32>,
    return
  }
  func.func @transform_0(%arg0: i32) -> (i32, i32) {
    %c0_i32 = arith.constant 0 : i32
    %c0_i32_0 = arith.constant 0 : i32
    return %arg0, %c0_i32 : i32, i32
  }
  func.func @transform_1(%arg0: i32) -> (i32, i32, i32) {
    %c0_i32 = arith.constant 0 : i32
    %c0_i32_0 = arith.constant 0 : i32
    %c0_i32_1 = arith.constant 0 : i32
    return %arg0, %c0_i32, %c0_i32_0 : i32, i32, i32
  }
  func.func @transform_2(%arg0: i32) -> (i32, i32) {
    %c0_i32 = arith.constant 0 : i32
    %c0_i32_0 = arith.constant 0 : i32
    return %arg0, %c0_i32 : i32, i32
  }
  func.func @transform_3(%arg0: i32) -> (i32, i32) {
    %c0_i32 = arith.constant 0 : i32
    %c0_i32_0 = arith.constant 0 : i32
    %c0_i32_1 = arith.constant 0 : i32
    return %c0_i32, %c0_i32_0 : i32, i32
  }
  func.func @transform_4(%arg0: i32) -> (i32, i32) {
    %c0_i32 = arith.constant 0 : i32
    %c0_i32_0 = arith.constant 0 : i32
    %c0_i32_1 = arith.constant 0 : i32
    return %c0_i32, %c0_i32_0 : i32, i32
  }
  func.func @transform_5(%arg0: i32) -> (i32, i32) {
    %c0_i32 = arith.constant 0 : i32
    %c0_i32_0 = arith.constant 0 : i32
    return %arg0, %c0_i32 : i32, i32
  }
  func.func @transform_6(%arg0: i32) -> (i32, i32) {
    %c0_i32 = arith.constant 0 : i32
    %c0_i32_0 = arith.constant 0 : i32
    return %arg0, %c0_i32 : i32, i32
  }
  func.func @transform_7(%arg0: i32) -> (i32, i32) {
    %c0_i32 = arith.constant 0 : i32
    %c0_i32_0 = arith.constant 0 : i32
    return %arg0, %c0_i32 : i32, i32
  }
}

</mosaic_0001>

<llo_original>
// kernel: smplx_cam_head_forward.2
$region0: #{smplx_cam_head_forward.2}
  #allocation0 [shape = 'u32[]', space=smem, size = 0x4, offset = 0x4, fixed_abs, tag = 'smem constant byte address 0x4 - core index']
  #allocation1 [shape = 'u32[144,128]{1,0:T(1,128)}', space=vmem, size = 0x12000, scoped, tag = 'internal scratch']
  %s0 = inlined_call_operand.vmem [shape: f32[2,256], index: 0, kind: input, shape index: {}]
  %s1 = inlined_call_operand.hbm [shape: f32[256,512], index: 1, kind: input, shape index: {}]
  %s2 = inlined_call_operand.vmem [shape: f32[2,512], index: 2, kind: output, shape index: {}]
  %s3 = sld [smem:[#allocation0]]
  $region22: #{smplx_cam_head_forward.2} parent=0
    _
  %s5 = ssub.s32 1, %s3
  %s6 = scalar_select 0, %s5, %s3
  $region1: #{smplx_cam_head_forward.2} parent=0
    #allocation2 [shape = 'u8[524288]{0}', space=vmem, size = 0x80000, scoped, tag = 'input window, operand 1, single buffered']
    #allocation3 [shape = 's32[1]{0}', space=sflag, size = 0x4, scoped, tag = 'scoped memory for smplx_cam_head_forward.2']
    %7 = vsyncpa [#allocation3], 0
    // Predicated region
    $region2: #{smplx_cam_head_forward.2} parent=1 // pred_check
      _
    $region3: #{smplx_cam_head_forward.2} parent=1 // pred_check_branch
      %9 = sbr.rel (0) target = $region5
    $region4: #{smplx_cam_head_forward.2} parent=1 // pred_region
      _
    $region5: #{smplx_cam_head_forward.2} parent=1 // pred_fallthru
      _
    // Predicated region
    $region6: #{smplx_cam_head_forward.2} parent=1 // pred_check
      _
    $region7: #{smplx_cam_head_forward.2} parent=1 // pred_check_branch
      %11 = sbr.rel (0) target = $region9
    $region8: #{smplx_cam_head_forward.2} parent=1 // pred_region
      %s13 = ssub.s32 16384, 16384
      %14 = vsyncadd [#allocation3], %s13
      %s15 = sshll.u32 [#allocation2], 4
      %s16 = int_to_ptr.vmem [resolvable:$true] %s15
      %21 = dma.hbm_to_vmem [thread:$0]  %s1, 16384, %s16, [#allocation3], 512, 512, 32
    $region9: #{smplx_cam_head_forward.2} parent=1 // pred_fallthru
      _
    // Predicated region
    $region10: #{smplx_cam_head_forward.2} parent=1 // pred_check
      _
    $region11: #{smplx_cam_head_forward.2} parent=1 // pred_check_branch
      %23 = sbr.rel (0) target = $region13
    $region12: #{smplx_cam_head_forward.2} parent=1 // pred_region
      %24 = dma.done [#allocation3], 16384
    $region13: #{smplx_cam_head_forward.2} parent=1 // pred_fallthru
      _
    %v25 = vld [vmem:[%s0] sm:$0xf]
    %v26 = vld [vmem:[#allocation2] sm:$0xff]
    %v27 = vld [vmem:[#allocation2 + $0x8] sm:$0xff]
    %v28 = vld [vmem:[#allocation2 + $0x10] sm:$0xff]
    %v29 = vld [vmem:[#allocation2 + $0x18] sm:$0xff]
    %v30 = vld [vmem:[#allocation2 + $0x20] sm:$0xff]
    %v31 = vld [vmem:[#allocation2 + $0x28] sm:$0xff]
    %v32 = vld [vmem:[#allocation2 + $0x30] sm:$0xff]
    %v33 = vld [vmem:[#allocation2 + $0x38] sm:$0xff]
    %v34 = vld [vmem:[#allocation2 + $0x40] sm:$0xff]
    %v35 = vld [vmem:[#allocation2 + $0x48] sm:$0xff]
    %v36 = vld [vmem:[#allocation2 + $0x50] sm:$0xff]
    %v37 = vld [vmem:[#allocation2 + $0x58] sm:$0xff]
    %v38 = vld [vmem:[#allocation2 + $0x60] sm:$0xff]
    %v39 = vld [vmem:[#allocation2 + $0x68] sm:$0xff]
    %v40 = vld [vmem:[#allocation2 + $0x70] sm:$0xff]
    %v41 = vld [vmem:[#allocation2 + $0x78] sm:$0xff]
    %v42 = vld [vmem:[#allocation2 + $0x80] sm:$0xff]
    %v43 = vld [vmem:[#allocation2 + $0x88] sm:$0xff]
    %v44 = vld [vmem:[#allocation2 + $0x90] sm:$0xff]
    %v45 = vld [vmem:[#allocation2 + $0x98] sm:$0xff]
    %v46 = vld [vmem:[#allocation2 + $0xa0] sm:$0xff]
    %v47 = vld [vmem:[#allocation2 + $0xa8] sm:$0xff]
    %v48 = vld [vmem:[#allocation2 + $0xb0] sm:$0xff]
    %v49 = vld [vmem:[#allocation2 + $0xb8] sm:$0xff]
    %v50 = vld [vmem:[#allocation2 + $0xc0] sm:$0xff]
    %v51 = vld [vmem:[#allocation2 + $0xc8] sm:$0xff]
    %v52 = vld [vmem:[#allocation2 + $0xd0] sm:$0xff]
    %v53 = vld [vmem:[#allocation2 + $0xd8] sm:$0xff]
    %v54 = vld [vmem:[#allocation2 + $0xe0] sm:$0xff]
    %v55 = vld [vmem:[#allocation2 + $0xe8] sm:$0xff]
    %v56 = vld [vmem:[#allocation2 + $0xf0] sm:$0xff]
    %v57 = vld [vmem:[#allocation2 + $0xf8] sm:$0xff]
    %v58 = vld [vmem:[#allocation2 + $0x100] sm:$0xff]
    %v59 = vld [vmem:[#allocation2 + $0x108] sm:$0xff]
    %v60 = vld [vmem:[#allocation2 + $0x110] sm:$0xff]
    %v61 = vld [vmem:[#allocation2 + $0x118] sm:$0xff]
    %v62 = vld [vmem:[#allocation2 + $0x120] sm:$0xff]
    %v63 = vld [vmem:[#allocation2 + $0x128] sm:$0xff]
    %v64 = vld [vmem:[#allocation2 + $0x130] sm:$0xff]
    %v65 = vld [vmem:[#allocation2 + $0x138] sm:$0xff]
    %v66 = vld [vmem:[#allocation2 + $0x140] sm:$0xff]
    %v67 = vld [vmem:[#allocation2 + $0x148] sm:$0xff]
    %v68 = vld [vmem:[#allocation2 + $0x150] sm:$0xff]
    %v69 = vld [vmem:[#allocation2 + $0x158] sm:$0xff]
    %v70 = vld [vmem:[#allocation2 + $0x160] sm:$0xff]
    %v71 = vld [vmem:[#allocation2 + $0x168] sm:$0xff]
    %v72 = vld [vmem:[#allocation2 + $0x170] sm:$0xff]
    %v73 = vld [vmem:[#allocation2 + $0x178] sm:$0xff]
    %v74 = vld [vmem:[#allocation2 + $0x180] sm:$0xff]
    %v75 = vld [vmem:[#allocation2 + $0x188] sm:$0xff]
    %v76 = vld [vmem:[#allocation2 + $0x190] sm:$0xff]
    %v77 = vld [vmem:[#allocation2 + $0x198] sm:$0xff]
    %v78 = vld [vmem:[#allocation2 + $0x1a0] sm:$0xff]
    %v79 = vld [vmem:[#allocation2 + $0x1a8] sm:$0xff]
    %v80 = vld [vmem:[#allocation2 + $0x1b0] sm:$0xff]
    %v81 = vld [vmem:[#allocation2 + $0x1b8] sm:$0xff]
    %v82 = vld [vmem:[#allocation2 + $0x1c0] sm:$0xff]
    %v83 = vld [vmem:[#allocation2 + $0x1c8] sm:$0xff]
    %v84 = vld [vmem:[#allocation2 + $0x1d0] sm:$0xff]
    %v85 = vld [vmem:[#allocation2 + $0x1d8] sm:$0xff]
    %v86 = vld [vmem:[#allocation2 + $0x1e0] sm:$0xff]
    %v87 = vld [vmem:[#allocation2 + $0x1e8] sm:$0xff]
    %v88 = vld [vmem:[#allocation2 + $0x1f0] sm:$0xff]
    %v89 = vld [vmem:[#allocation2 + $0x1f8] sm:$0xff]
    %v90 = vld [vmem:[#allocation2 + $0x200] sm:$0xff]
    %v91 = vld [vmem:[#allocation2 + $0x208] sm:$0xff]
    %v92 = vld [vmem:[#allocation2 + $0x210] sm:$0xff]
    %v93 = vld [vmem:[#allocation2 + $0x218] sm:$0xff]
    %v94 = vld [vmem:[#allocation2 + $0x220] sm:$0xff]
    %v95 = vld [vmem:[#allocation2 + $0x228] sm:$0xff]
    %v96 = vld [vmem:[#allocation2 + $0x230] sm:$0xff]
    %v97 = vld [vmem:[#allocation2 + $0x238] sm:$0xff]
    %v98 = vld [vmem:[#allocation2 + $0x240] sm:$0xff]
    %v99 = vld [vmem:[#allocation2 + $0x248] sm:$0xff]
    %v100 = vld [vmem:[#allocation2 + $0x250] sm:$0xff]
    %v101 = vld [vmem:[#allocation2 + $0x258] sm:$0xff]
    %v102 = vld [vmem:[#allocation2 + $0x260] sm:$0xff]
    %v103 = vld [vmem:[#allocation2 + $0x268] sm:$0xff]
    %v104 = vld [vmem:[#allocation2 + $0x270] sm:$0xff]
    %v105 = vld [vmem:[#allocation2 + $0x278] sm:$0xff]
    %v106 = vld [vmem:[#allocation2 + $0x280] sm:$0xff]
    %v107 = vld [vmem:[#allocation2 + $0x288] sm:$0xff]
    %v108 = vld [vmem:[#allocation2 + $0x290] sm:$0xff]
    %v109 = vld [vmem:[#allocation2 + $0x298] sm:$0xff]
    %v110 = vld [vmem:[#allocation2 + $0x2a0] sm:$0xff]
    %v111 = vld [vmem:[#allocation2 + $0x2a8] sm:$0xff]
    %v112 = vld [vmem:[#allocation2 + $0x2b0] sm:$0xff]
    %v113 = vld [vmem:[#allocation2 + $0x2b8] sm:$0xff]
    %v114 = vld [vmem:[#allocation2 + $0x2c0] sm:$0xff]
    %v115 = vld [vmem:[#allocation2 + $0x2c8] sm:$0xff]
    %v116 = vld [vmem:[#allocation2 + $0x2d0] sm:$0xff]
    %v117 = vld [vmem:[#allocation2 + $0x2d8] sm:$0xff]
    %v118 = vld [vmem:[#allocation2 + $0x2e0] sm:$0xff]
    %v119 = vld [vmem:[#allocation2 + $0x2e8] sm:$0xff]
    %v120 = vld [vmem:[#allocation2 + $0x2f0] sm:$0xff]
    %v121 = vld [vmem:[#allocation2 + $0x2f8] sm:$0xff]
    %v122 = vld [vmem:[#allocation2 + $0x300] sm:$0xff]
    %v123 = vld [vmem:[#allocation2 + $0x308] sm:$0xff]
    %v124 = vld [vmem:[#allocation2 + $0x310] sm:$0xff]
    %v125 = vld [vmem:[#allocation2 + $0x318] sm:$0xff]
    %v126 = vld [vmem:[#allocation2 + $0x320] sm:$0xff]
    %v127 = vld [vmem:[#allocation2 + $0x328] sm:$0xff]
    %v128 = vld [vmem:[#allocation2 + $0x330] sm:$0xff]
    %v129 = vld [vmem:[#allocation2 + $0x338] sm:$0xff]
    %v130 = vld [vmem:[#allocation2 + $0x340] sm:$0xff]
    %v131 = vld [vmem:[#allocation2 + $0x348] sm:$0xff]
    %v132 = vld [vmem:[#allocation2 + $0x350] sm:$0xff]
    %v133 = vld [vmem:[#allocation2 + $0x358] sm:$0xff]
    %v134 = vld [vmem:[#allocation2 + $0x360] sm:$0xff]
    %v135 = vld [vmem:[#allocation2 + $0x368] sm:$0xff]
    %v136 = vld [vmem:[#allocation2 + $0x370] sm:$0xff]
    %v137 = vld [vmem:[#allocation2 + $0x378] sm:$0xff]
    %v138 = vld [vmem:[#allocation2 + $0x380] sm:$0xff]
    %v139 = vld [vmem:[#allocation2 + $0x388] sm:$0xff]
    %v140 = vld [vmem:[#allocation2 + $0x390] sm:$0xff]
    %v141 = vld [vmem:[#allocation2 + $0x398] sm:$0xff]
    %v142 = vld [vmem:[#allocation2 + $0x3a0] sm:$0xff]
    %v143 = vld [vmem:[#allocation2 + $0x3a8] sm:$0xff]
    %v144 = vld [vmem:[#allocation2 + $0x3b0] sm:$0xff]
    %v145 = vld [vmem:[#allocation2 + $0x3b8] sm:$0xff]
    %v146 = vld [vmem:[#allocation2 + $0x3c0] sm:$0xff]
    %v147 = vld [vmem:[#allocation2 + $0x3c8] sm:$0xff]
    %v148 = vld [vmem:[#allocation2 + $0x3d0] sm:$0xff]
    %v149 = vld [vmem:[#allocation2 + $0x3d8] sm:$0xff]
    %v150 = vld [vmem:[#allocation2 + $0x3e0] sm:$0xff]
    %v151 = vld [vmem:[#allocation2 + $0x3e8] sm:$0xff]
    %v152 = vld [vmem:[#allocation2 + $0x3f0] sm:$0xff]
    %v153 = vld [vmem:[#allocation2 + $0x3f8] sm:$0xff]
    %v156 = vunpack.c.l.s4 1983009808
    %v157 = vunpack.c.0.s8 %v156
    %v158 = vlaneseq
    %v159 = vshrl.u32 %v158, 7
    %v160 = vsub.s32 %v157, %v159
    %v161 = vrot.slane %v25, %v160
    %v162 = vcombine.high %v161, %v161
    %165 = vmatprep.subr.mxu0 %v27
    %166 = vmatpush1.msra.mxu0 %v26
    %167 = vmatprep.subr.mxu0 %v31
    %168 = vmatpush1.msra.mxu0 %v30
    %169 = vmatprep.subr.mxu0 %v35
    %170 = vmatpush1.msra.mxu0 %v34
    %171 = vmatprep.subr.mxu0 %v39
    %172 = vmatpush1.msra.mxu0 %v38
    %173 = vmatprep.subr.mxu0 %v43
    %174 = vmatpush1.msra.mxu0 %v42
    %175 = vmatprep.subr.mxu0 %v47
    %176 = vmatpush1.msra.mxu0 %v46
    %177 = vmatprep.subr.mxu0 %v51
    %178 = vmatpush1.msra.mxu0 %v50
    %179 = vmatprep.subr.mxu0 %v55
    %180 = vmatpush1.msra.mxu0 %v54
    %181 = vmatprep.subr.mxu0 %v59
    %182 = vmatpush1.msra.mxu0 %v58
    %183 = vmatprep.subr.mxu0 %v63
    %184 = vmatpush1.msra.mxu0 %v62
    %185 = vmatprep.subr.mxu0 %v67
    %186 = vmatpush1.msra.mxu0 %v66
    %187 = vmatprep.subr.mxu0 %v71
    %188 = vmatpush1.msra.mxu0 %v70
    %189 = vmatprep.subr.mxu0 %v75
    %190 = vmatpush1.msra.mxu0 %v74
    %191 = vmatprep.subr.mxu0 %v79
    %192 = vmatpush1.msra.mxu0 %v78
    %193 = vmatprep.subr.mxu0 %v83
    %194 = vmatpush1.msra.mxu0 %v82
    %195 = vmatprep.subr.mxu0 %v87
    %196 = vmatpush1.msra.mxu0 %v86
    %197 = vmatprep.subr.mxu0 %v91
    %198 = vmatpush1.msra.mxu0 %v90
    %199 = vmatprep.subr.mxu0 %v95
    %200 = vmatpush1.msra.mxu0 %v94
    %201 = vmatprep.subr.mxu0 %v99
    %202 = vmatpush1.msra.mxu0 %v98
    %203 = vmatprep.subr.mxu0 %v103
    %204 = vmatpush1.msra.mxu0 %v102
    %205 = vmatprep.subr.mxu0 %v107
    %206 = vmatpush1.msra.mxu0 %v106
    %207 = vmatprep.subr.mxu0 %v111
    %208 = vmatpush1.msra.mxu0 %v110
    %209 = vmatprep.subr.mxu0 %v115
    %210 = vmatpush1.msra.mxu0 %v114
    %211 = vmatprep.subr.mxu0 %v119
    %212 = vmatpush1.msra.mxu0 %v118
    %213 = vmatprep.subr.mxu0 %v123
    %214 = vmatpush1.msra.mxu0 %v122
    %215 = vmatprep.subr.mxu0 %v127
    %216 = vmatpush1.msra.mxu0 %v126
    %217 = vmatprep.subr.mxu0 %v131
    %218 = vmatpush1.msra.mxu0 %v130
    %219 = vmatprep.subr.mxu0 %v135
    %220 = vmatpush1.msra.mxu0 %v134
    %221 = vmatprep.subr.mxu0 %v139
    %222 = vmatpush1.msra.mxu0 %v138
    %223 = vmatprep.subr.mxu0 %v143
    %224 = vmatpush1.msra.mxu0 %v142
    %225 = vmatprep.subr.mxu0 %v147
    %226 = vmatpush1.msra.mxu0 %v146
    %227 = vmatprep.subr.mxu0 %v151
    %228 = vmatpush1.msra.mxu0 %v150
    %229 = vmatprep.mubr.f32.mxu0 %v162
    %230 = vmatmul.mubr.f32.gmra.mrb[0].mxu0 %v161
    %v231 = vpop.f32.mrb[0].mxu0
    %v232 = vadd.f32 0.0, %v231
    %v233 = vpop.f32.mrb[0].mxu0
    %v234 = vadd.f32 0.0, %v233
    %235 = vdwg.mxu0
    %236 = vmatprep.subr.mxu0 %v29
    %237 = vmatpush1.msra.mxu0 %v28
    %238 = vmatprep.subr.mxu0 %v33
    %239 = vmatpush1.msra.mxu0 %v32
    %240 = vmatprep.subr.mxu0 %v37
    %241 = vmatpush1.msra.mxu0 %v36
    %242 = vmatprep.subr.mxu0 %v41
    %243 = vmatpush1.msra.mxu0 %v40
    %244 = vmatprep.subr.mxu0 %v45
    %245 = vmatpush1.msra.mxu0 %v44
    %246 = vmatprep.subr.mxu0 %v49
    %247 = vmatpush1.msra.mxu0 %v48
    %248 = vmatprep.subr.mxu0 %v53
    %249 = vmatpush1.msra.mxu0 %v52
    %250 = vmatprep.subr.mxu0 %v57
    %251 = vmatpush1.msra.mxu0 %v56
    %252 = vmatprep.subr.mxu0 %v61
    %253 = vmatpush1.msra.mxu0 %v60
    %254 = vmatprep.subr.mxu0 %v65
    %255 = vmatpush1.msra.mxu0 %v64
    %256 = vmatprep.subr.mxu0 %v69
    %257 = vmatpush1.msra.mxu0 %v68
    %258 = vmatprep.subr.mxu0 %v73
    %259 = vmatpush1.msra.mxu0 %v72
    %260 = vmatprep.subr.mxu0 %v77
    %261 = vmatpush1.msra.mxu0 %v76
    %262 = vmatprep.subr.mxu0 %v81
    %263 = vmatpush1.msra.mxu0 %v80
    %264 = vmatprep.subr.mxu0 %v85
    %265 = vmatpush1.msra.mxu0 %v84
    %266 = vmatprep.subr.mxu0 %v89
    %267 = vmatpush1.msra.mxu0 %v88
    %268 = vmatprep.subr.mxu0 %v93
    %269 = vmatpush1.msra.mxu0 %v92
    %270 = vmatprep.subr.mxu0 %v97
    %271 = vmatpush1.msra.mxu0 %v96
    %272 = vmatprep.subr.mxu0 %v101
    %273 = vmatpush1.msra.mxu0 %v100
    %274 = vmatprep.subr.mxu0 %v105
    %275 = vmatpush1.msra.mxu0 %v104
    %276 = vmatprep.subr.mxu0 %v109
    %277 = vmatpush1.msra.mxu0 %v108
    %278 = vmatprep.subr.mxu0 %v113
    %279 = vmatpush1.msra.mxu0 %v112
    %280 = vmatprep.subr.mxu0 %v117
    %281 = vmatpush1.msra.mxu0 %v116
    %282 = vmatprep.subr.mxu0 %v121
    %283 = vmatpush1.msra.mxu0 %v120
    %284 = vmatprep.subr.mxu0 %v125
    %285 = vmatpush1.msra.mxu0 %v124
    %286 = vmatprep.subr.mxu0 %v129
    %287 = vmatpush1.msra.mxu0 %v128
    %288 = vmatprep.subr.mxu0 %v133
    %289 = vmatpush1.msra.mxu0 %v132
    %290 = vmatprep.subr.mxu0 %v137
    %291 = vmatpush1.msra.mxu0 %v136
    %292 = vmatprep.subr.mxu0 %v141
    %293 = vmatpush1.msra.mxu0 %v140
    %294 = vmatprep.subr.mxu0 %v145
    %295 = vmatpush1.msra.mxu0 %v144
    %296 = vmatprep.subr.mxu0 %v149
    %297 = vmatpush1.msra.mxu0 %v148
    %298 = vmatprep.subr.mxu0 %v153
    %299 = vmatpush1.msra.mxu0 %v152
    %300 = vmatprep.mubr.f32.mxu0 %v162
    %301 = vmatmul.mubr.f32.gmra.mrb[0].mxu0 %v161
    %v302 = vpop.f32.mrb[0].mxu0
    %v303 = vadd.f32 0.0, %v302
    %v304 = vpop.f32.mrb[0].mxu0
    %v305 = vadd.f32 0.0, %v304
    %306 = vdwg.mxu0
    %v311 = vcombine.low %v232, %v234
    %v312 = vcombine.low %v303, %v305
    %v314 = vunpack.c.l.s4 1983009808
    %v315 = vunpack.c.0.s8 %v314
    %v316 = vlaneseq
    %v317 = vshrl.u32 %v316, 7
    %v318 = vsub.s32 %v315, %v317
    %v319 = vrot.slane %v311, %v318
    %v321 = vunpack.c.l.s4 1983009808
    %v322 = vunpack.c.0.s8 %v321
    %v323 = vlaneseq
    %v324 = vshrl.u32 %v323, 7
    %v325 = vsub.s32 %v322, %v324
    %v326 = vrot.slane %v312, %v325
    %v327 = vcombine.low %v319, %v326
    %329 = vst [vmem:[%s2] sm:$0xff] %v327
    // Predicated region
    $region14: #{smplx_cam_head_forward.2} parent=1 // pred_check
      _
    $region15: #{smplx_cam_head_forward.2} parent=1 // pred_check_branch
      %331 = sbr.rel (0) target = $region17
    $region16: #{smplx_cam_head_forward.2} parent=1 // pred_region
      _
    $region17: #{smplx_cam_head_forward.2} parent=1 // pred_fallthru
      _
    // Predicated region
    $region18: #{smplx_cam_head_forward.2} parent=1 // pred_check
      _
    $region19: #{smplx_cam_head_forward.2} parent=1 // pred_check_branch
      %333 = sbr.rel (0) target = $region21
    $region20: #{smplx_cam_head_forward.2} parent=1 // pred_region
      _
    $region21: #{smplx_cam_head_forward.2} parent=1 // pred_fallthru
      _
    %334 = vsyncpa [#allocation3], 1

// kernel: smplx_cam_head_forward.3
$region0: #{smplx_cam_head_forward.3}
  #allocation0 [shape = 'u32[]', space=smem, size = 0x4, offset = 0x4, fixed_abs, tag = 'smem constant byte address 0x4 - core index']
  #allocation1 [shape = 'u32[144,128]{1,0:T(1,128)}', space=vmem, size = 0x12000, scoped, tag = 'internal scratch']
  #allocation2 [shape = 'f32[24,128]{1,0:T(8,128)}', space=vmem, size = 0x3000, scoped, tag = 'scratch operand']
  #allocation3 [shape = 'f32[6,128]{1,0:T(8,128)}', space=vmem, size = 0x1000, scoped, tag = 'scratch operand']
  %s0 = inlined_call_operand.vmem [shape: f32[2,512], index: 0, kind: input, shape index: {}]
  %s1 = inlined_call_operand.vmem [shape: f32[1,24,22], index: 1, kind: input, shape index: {}]
  %s2 = inlined_call_operand.vmem [shape: f32[2,128], index: 2, kind: input, shape index: {}]
  %s3 = inlined_call_operand.vmem [shape: f32[22,128], index: 3, kind: input, shape index: {}]
  %s4 = inlined_call_operand.vmem [shape: f32[128,128], index: 4, kind: input, shape index: {}]
  %s5 = inlined_call_operand.vmem [shape: f32[2,384], index: 5, kind: output, shape index: {0}]
  %s6 = inlined_call_operand.vmem [shape: f32[2,384], index: 6, kind: output, shape index: {1}]
  %s7 = inlined_call_operand.vmem [shape: f32[2,256], index: 7, kind: output, shape index: {2}]
  %8 = xla_tuple %s5, %s6, %s7
  %s9 = sld [smem:[#allocation0]]
  $region46: #{smplx_cam_head_forward.3} parent=0
    _
  %s11 = ssub.s32 1, %s9
  %s12 = scalar_select 0, %s11, %s9
  // Predicated region
  $region2: #{smplx_cam_head_forward.3} parent=0 // pred_check
    _
  $region3: #{smplx_cam_head_forward.3} parent=0 // pred_check_branch
    %14 = sbr.rel (0) target = $region5
  $region4: #{smplx_cam_head_forward.3} parent=0 // pred_region
    _
  $region5: #{smplx_cam_head_forward.3} parent=0 // pred_fallthru
    _
  // Predicated region
  $region6: #{smplx_cam_head_forward.3} parent=0 // pred_check
    _
  $region7: #{smplx_cam_head_forward.3} parent=0 // pred_check_branch
    %16 = sbr.rel (0) target = $region9
  $region8: #{smplx_cam_head_forward.3} parent=0 // pred_region
    _
  $region9: #{smplx_cam_head_forward.3} parent=0 // pred_fallthru
    _
  // Predicated region
  $region10: #{smplx_cam_head_forward.3} parent=0 // pred_check
    _
  $region11: #{smplx_cam_head_forward.3} parent=0 // pred_check_branch
    %18 = sbr.rel (0) target = $region13
  $region12: #{smplx_cam_head_forward.3} parent=0 // pred_region
    _
  $region13: #{smplx_cam_head_forward.3} parent=0 // pred_fallthru
    _
  // Predicated region
  $region14: #{smplx_cam_head_forward.3} parent=0 // pred_check
    _
  $region15: #{smplx_cam_head_forward.3} parent=0 // pred_check_branch
    %20 = sbr.rel (0) target = $region17
  $region16: #{smplx_cam_head_forward.3} parent=0 // pred_region
    _
  $region17: #{smplx_cam_head_forward.3} parent=0 // pred_fallthru
    _
  // Predicated region
  $region18: #{smplx_cam_head_forward.3} parent=0 // pred_check
    _
  $region19: #{smplx_cam_head_forward.3} parent=0 // pred_check_branch
    %22 = sbr.rel (0) target = $region21
  $region20: #{smplx_cam_head_forward.3} parent=0 // pred_region
    _
  $region21: #{smplx_cam_head_forward.3} parent=0 // pred_fallthru
    _
  %v23 = vld [vmem:[%s1] sm:$0xff]
  %v24 = vld [vmem:[%s1 + $0x8] sm:$0xff]
  %v25 = vld [vmem:[%s1 + $0x10] sm:$0xff]
  %v26 = vld [vmem:[%s3] sm:$0xff]
  %v27 = vld [vmem:[%s3 + $0x8] sm:$0xff]
  %v28 = vld [vmem:[%s3 + $0x10] sm:$0x3f]
  %vm29 = vcmask 179200
  %v31 = vsel %vm29, %v23, 0
  %v34 = vsel %vm29, %v24, 0
  %v37 = vsel %vm29, %v25, 0
  %vm39 = vcmask 1045504
  %v41 = vsel %vm39, %v28, 0
  %43 = vmatprep.subr.mxu0 0.0
  %44 = vmatpush1.msra.mxu0 %v26
  %45 = vmatprep.subr.mxu0 0.0
  %46 = vmatpush1.msra.mxu0 %v27
  %47 = vmatprep.subr.mxu0 0.0
  %48 = vmatpush1.msra.mxu0 %v41
  %49 = vmatprep.subr.mxu0 0.0
  %50 = vmatpush1.msra.mxu0 0.0
  %51 = vmatprep.subr.mxu0 0.0
  %52 = vmatpush1.msra.mxu0 0.0
  %53 = vmatprep.subr.mxu0 0.0
  %54 = vmatpush1.msra.mxu0 0.0
  %55 = vmatprep.subr.mxu0 0.0
  %56 = vmatpush1.msra.mxu0 0.0
  %57 = vmatprep.subr.mxu0 0.0
  %58 = vmatpush1.msra.mxu0 0.0
  %59 = vmatprep.subr.mxu0 0.0
  %60 = vmatpush1.msra.mxu0 0.0
  %61 = vmatprep.subr.mxu0 0.0
  %62 = vmatpush1.msra.mxu0 0.0
  %63 = vmatprep.subr.mxu0 0.0
  %64 = vmatpush1.msra.mxu0 0.0
  %65 = vmatprep.subr.mxu0 0.0
  %66 = vmatpush1.msra.mxu0 0.0
  %67 = vmatprep.subr.mxu0 0.0
  %68 = vmatpush1.msra.mxu0 0.0
  %69 = vmatprep.subr.mxu0 0.0
  %70 = vmatpush1.msra.mxu0 0.0
  %71 = vmatprep.subr.mxu0 0.0
  %72 = vmatpush1.msra.mxu0 0.0
  %73 = vmatprep.subr.mxu0 0.0
  %74 = vmatpush1.msra.mxu0 0.0
  %75 = vmatprep.subr.mxu0 0.0
  %76 = vmatpush1.msra.mxu0 0.0
  %77 = vmatprep.subr.mxu0 0.0
  %78 = vmatpush1.msra.mxu0 0.0
  %79 = vmatprep.subr.mxu0 0.0
  %80 = vmatpush1.msra.mxu0 0.0
  %81 = vmatprep.subr.mxu0 0.0
  %82 = vmatpush1.msra.mxu0 0.0
  %83 = vmatprep.subr.mxu0 0.0
  %84 = vmatpush1.msra.mxu0 0.0
  %85 = vmatprep.subr.mxu0 0.0
  %86 = vmatpush1.msra.mxu0 0.0
  %87 = vmatprep.subr.mxu0 0.0
  %88 = vmatpush1.msra.mxu0 0.0
  %89 = vmatprep.subr.mxu0 0.0
  %90 = vmatpush1.msra.mxu0 0.0
  %91 = vmatprep.subr.mxu0 0.0
  %92 = vmatpush1.msra.mxu0 0.0
  %93 = vmatprep.subr.mxu0 0.0
  %94 = vmatpush1.msra.mxu0 0.0
  %95 = vmatprep.subr.mxu0 0.0
  %96 = vmatpush1.msra.mxu0 0.0
  %97 = vmatprep.subr.mxu0 0.0
  %98 = vmatpush1.msra.mxu0 0.0
  %99 = vmatprep.subr.mxu0 0.0
  %100 = vmatpush1.msra.mxu0 0.0
  %101 = vmatprep.subr.mxu0 0.0
  %102 = vmatpush1.msra.mxu0 0.0
  %103 = vmatprep.subr.mxu0 0.0
  %104 = vmatpush1.msra.mxu0 0.0
  %105 = vmatprep.subr.mxu0 0.0
  %106 = vmatpush1.msra.mxu0 0.0
  %107 = vmatprep.mubr.f32.mxu0 0.0
  %108 = vmatmul.mubr.f32.gmra.mrb[0].mxu0 %v31
  %v109 = vpop.f32.mrb[0].mxu0
  %v110 = vadd.f32 0.0, %v109
  %v111 = vpop.f32.mrb[0].mxu0
  %112 = vmatprep.mubr.f32.mxu0 0.0
  %113 = vmatmul.mubr.f32.gmra.mrb[0].mxu0 %v34
  %v114 = vpop.f32.mrb[0].mxu0
  %v115 = vadd.f32 0.0, %v114
  %v116 = vpop.f32.mrb[0].mxu0
  %117 = vmatprep.mubr.f32.mxu0 0.0
  %118 = vmatmul.mubr.f32.gmra.mrb[0].mxu0 %v37
  %v119 = vpop.f32.mrb[0].mxu0
  %v120 = vadd.f32 0.0, %v119
  %v121 = vpop.f32.mrb[0].mxu0
  %122 = vdwg.mxu0
  %123 = vst [vmem:[#allocation2] sm:$0xff] %v110
  %124 = vst [vmem:[#allocation2 + $0x8] sm:$0xff] %v115
  %125 = vst [vmem:[#allocation2 + $0x10] sm:$0xff] %v120
  %v126 = vld [vmem:[%s0] sm:$0x3]
  %v127 = vld [vmem:[%s0 + $0x2] sm:$0x3]
  %v128 = vld [vmem:[%s0 + $0x4] sm:$0x3]
  %v129 = vld [vmem:[#allocation2] sm:$0x3]
  %v130 = vmul.f32 %v129, %v126
  %v131 = vld [vmem:[#allocation2 + $0x2] sm:$0x3]
  %v132 = vmul.f32 %v131, %v127
  %v133 = vadd.f32 %v130, %v132
  %v134 = vld [vmem:[#allocation2 + $0x4] sm:$0x3]
  %v135 = vmul.f32 %v134, %v128
  %v136 = vadd.f32 %v133, %v135
  %v137 = vld [vmem:[#allocation2 + $0x6] sm:$0x3]
  %v138 = vadd.f32 %v136, %v137
  %v139 = vld [vmem:[#allocation2 + $0x8] sm:$0x3]
  %v140 = vmul.f32 %v139, %v126
  %v141 = vld [vmem:[#allocation2 + $0xa] sm:$0x3]
  %v142 = vmul.f32 %v141, %v127
  %v143 = vadd.f32 %v140, %v142
  %v144 = vld [vmem:[#allocation2 + $0xc] sm:$0x3]
  %v145 = vmul.f32 %v144, %v128
  %v146 = vadd.f32 %v143, %v145
  %v147 = vld [vmem:[#allocation2 + $0xe] sm:$0x3]
  %v148 = vadd.f32 %v146, %v147
  %v149 = vld [vmem:[#allocation2 + $0x10] sm:$0x3]
  %v150 = vmul.f32 %v149, %v126
  %v151 = vld [vmem:[#allocation2 + $0x12] sm:$0x3]
  %v152 = vmul.f32 %v151, %v127
  %v153 = vadd.f32 %v150, %v152
  %v154 = vld [vmem:[#allocation2 + $0x14] sm:$0x3]
  %v155 = vmul.f32 %v154, %v128
  %v156 = vadd.f32 %v153, %v155
  %v157 = vld [vmem:[#allocation2 + $0x16] sm:$0x3]
  %v158 = vadd.f32 %v156, %v157
  %159 = vst [vmem:[%s5] sm:$0x3] %v138
  %160 = vst [vmem:[%s5 + $0x2] sm:$0x3] %v148
  %161 = vst [vmem:[%s5 + $0x4] sm:$0x3] %v158
  %162 = vst [vmem:[#allocation3] sm:$0x3] %v138
  %163 = vst [vmem:[#allocation3 + $0x2] sm:$0x3] %v148
  %164 = vst [vmem:[#allocation3 + $0x4] sm:$0x3] %v158
  %v165 = vld [vmem:[#allocation3] sm:$0x3f]
  %v166 = vld [vmem:[%s4] sm:$0xff]
  %v167 = vld [vmem:[%s4 + $0x8] sm:$0xff]
  %v168 = vld [vmem:[%s4 + $0x10] sm:$0xff]
  %v169 = vld [vmem:[%s4 + $0x18] sm:$0xff]
  %v170 = vld [vmem:[%s4 + $0x20] sm:$0xff]
  %v171 = vld [vmem:[%s4 + $0x28] sm:$0xff]
  %v172 = vld [vmem:[%s4 + $0x30] sm:$0xff]
  %v173 = vld [vmem:[%s4 + $0x38] sm:$0xff]
  %v174 = vld [vmem:[%s4 + $0x40] sm:$0xff]
  %v175 = vld [vmem:[%s4 + $0x48] sm:$0xff]
  %v176 = vld [vmem:[%s4 + $0x50] sm:$0xff]
  %v177 = vld [vmem:[%s4 + $0x58] sm:$0xff]
  %v178 = vld [vmem:[%s4 + $0x60] sm:$0xff]
  %v179 = vld [vmem:[%s4 + $0x68] sm:$0xff]
  %v180 = vld [vmem:[%s4 + $0x70] sm:$0xff]
  %v181 = vld [vmem:[%s4 + $0x78] sm:$0xff]
  %182 = vmatprep.subr.mxu0 0.0
  %183 = vmatpush1.msra.mxu0 %v166
  %184 = vmatprep.subr.mxu0 0.0
  %185 = vmatpush1.msra.mxu0 %v167
  %186 = vmatprep.subr.mxu0 0.0
  %187 = vmatpush1.msra.mxu0 %v168
  %188 = vmatprep.subr.mxu0 0.0
  %189 = vmatpush1.msra.mxu0 %v169
  %190 = vmatprep.subr.mxu0 0.0
  %191 = vmatpush1.msra.mxu0 %v170
  %192 = vmatprep.subr.mxu0 0.0
  %193 = vmatpush1.msra.mxu0 %v171
  %194 = vmatprep.subr.mxu0 0.0
  %195 = vmatpush1.msra.mxu0 %v172
  %196 = vmatprep.subr.mxu0 0.0
  %197 = vmatpush1.msra.mxu0 %v173
  %198 = vmatprep.subr.mxu0 0.0
  %199 = vmatpush1.msra.mxu0 %v174
  %200 = vmatprep.subr.mxu0 0.0
  %201 = vmatpush1.msra.mxu0 %v175
  %202 = vmatprep.subr.mxu0 0.0
  %203 = vmatpush1.msra.mxu0 %v176
  %204 = vmatprep.subr.mxu0 0.0
  %205 = vmatpush1.msra.mxu0 %v177
  %206 = vmatprep.subr.mxu0 0.0
  %207 = vmatpush1.msra.mxu0 %v178
  %208 = vmatprep.subr.mxu0 0.0
  %209 = vmatpush1.msra.mxu0 %v179
  %210 = vmatprep.subr.mxu0 0.0
  %211 = vmatpush1.msra.mxu0 %v180
  %212 = vmatprep.subr.mxu0 0.0
  %213 = vmatpush1.msra.mxu0 %v181
  %214 = vmatprep.subr.mxu0 0.0
  %215 = vmatpush1.msra.mxu0 0.0
  %216 = vmatprep.subr.mxu0 0.0
  %217 = vmatpush1.msra.mxu0 0.0
  %218 = vmatprep.subr.mxu0 0.0
  %219 = vmatpush1.msra.mxu0 0.0
  %220 = vmatprep.subr.mxu0 0.0
  %221 = vmatpush1.msra.mxu0 0.0
  %222 = vmatprep.subr.mxu0 0.0
  %223 = vmatpush1.msra.mxu0 0.0
  %224 = vmatprep.subr.mxu0 0.0
  %225 = vmatpush1.msra.mxu0 0.0
  %226 = vmatprep.subr.mxu0 0.0
  %227 = vmatpush1.msra.mxu0 0.0
  %228 = vmatprep.subr.mxu0 0.0
  %229 = vmatpush1.msra.mxu0 0.0
  %230 = vmatprep.subr.mxu0 0.0
  %231 = vmatpush1.msra.mxu0 0.0
  %232 = vmatprep.subr.mxu0 0.0
  %233 = vmatpush1.msra.mxu0 0.0
  %234 = vmatprep.subr.mxu0 0.0
  %235 = vmatpush1.msra.mxu0 0.0
  %236 = vmatprep.subr.mxu0 0.0
  %237 = vmatpush1.msra.mxu0 0.0
  %238 = vmatprep.subr.mxu0 0.0
  %239 = vmatpush1.msra.mxu0 0.0
  %240 = vmatprep.subr.mxu0 0.0
  %241 = vmatpush1.msra.mxu0 0.0
  %242 = vmatprep.subr.mxu0 0.0
  %243 = vmatpush1.msra.mxu0 0.0
  %244 = vmatprep.subr.mxu0 0.0
  %245 = vmatpush1.msra.mxu0 0.0
  %246 = vmatprep.mubr.f32.mxu0 0.0
  %247 = vmatmul.mubr.f32.gmra.mrb[0].mxu0 %v165
  %v248 = vpop.f32.mrb[0].mxu0
  %v249 = vadd.f32 0.0, %v248
  %v250 = vpop.f32.mrb[0].mxu0
  %251 = vdwg.mxu0
  %252 = vst [vmem:[%s6] sm:$0x3] %v249
  %v255 = vunpack.c.l.s4 1983009808
  %v256 = vunpack.c.0.s8 %v255
  %v257 = vlaneseq
  %v258 = vshrl.u32 %v257, 7
  %v259 = vsub.s32 %v256, %v258
  %v260 = vrot.slane %v249, %v259
  %v261 = vcombine.high %v260, %v260
  %263 = vst [vmem:[%s6 + $0x2] sm:$0x3] %v261
  %v264 = vcombine.high %v249, %v249
  %v266 = vunpack.c.l.s4 1983009808
  %v267 = vunpack.c.0.s8 %v266
  %v268 = vlaneseq
  %v269 = vshrl.u32 %v268, 7
  %v270 = vsub.s32 %v267, %v269
  %v271 = vrot.slane %v264, %v270
  %273 = vst [vmem:[%s6 + $0x4] sm:$0x3] %v271
  %v274 = vld [vmem:[%s2] sm:$0x3]
  %276 = vset.pattern.permute.xlu0 2
  %277 = vperm.xlu0 %276, %v274
  %v278 = vpop.permute.xlu0 %277
  %v279 = vrot.slane %v278, 4
  %v281 = vadd.f32 %v249, %v279
  %v282 = vrcp.pop %v281
  %283 = vset.pattern.permute.xlu0 0
  %284 = vperm.xlu0 %283, %v274
  %v285 = vpop.permute.xlu0 %284
  %v287 = vadd.f32 %v249, %v285
  %v289 = vrot.slane %v282, 4
  %v291 = vmul.f32 %v287, %v289
  %292 = vset.pattern.permute.xlu0 1
  %293 = vperm.xlu0 %292, %v274
  %v294 = vpop.permute.xlu0 %293
  %v295 = vrot.slane %v294, 6
  %v297 = vadd.f32 %v249, %v295
  %v298 = vrot.slane %v282, 2
  %v300 = vmul.f32 %v297, %v298
  %301 = vset.pattern.permute.xlu0 3
  %302 = vperm.xlu0 %301, %v274
  %v303 = vpop.permute.xlu0 %302
  %v305 = vmul.f32 %v303, %v291
  %306 = vset.pattern.permute.xlu0 4
  %307 = vperm.xlu0 %306, %v274
  %v308 = vpop.permute.xlu0 %307
  %v311 = vrot.slane %v300, 2
  %v313 = vmul.f32 %v308, %v311
  %v314 = vadd.f32 %v305, %v313
  %315 = vset.pattern.permute.xlu0 5
  %316 = vperm.xlu0 %315, %v274
  %v317 = vpop.permute.xlu0 %316
  %v319 = vadd.f32 %v314, %v317
  %320 = vst [vmem:[%s7] sm:$0x3] %v319
  %321 = vset.pattern.permute.xlu0 6
  %322 = vperm.xlu0 %321, %v274
  %v323 = vpop.permute.xlu0 %322
  %v325 = vmul.f32 %v323, %v291
  %326 = vset.pattern.permute.xlu0 7
  %327 = vperm.xlu0 %326, %v274
  %v328 = vpop.permute.xlu0 %327
  %v330 = vmul.f32 %v328, %v311
  %v331 = vadd.f32 %v325, %v330
  %332 = vset.pattern.permute.xlu0 8
  %333 = vperm.xlu0 %332, %v274
  %v334 = vpop.permute.xlu0 %333
  %v336 = vadd.f32 %v331, %v334
  %337 = vst [vmem:[%s7 + $0x2] sm:$0x3] %v336
  // Predicated region
  $region22: #{smplx_cam_head_forward.3} parent=0 // pred_check
    _
  $region23: #{smplx_cam_head_forward.3} parent=0 // pred_check_branch
    %339 = sbr.rel (0) target = $region25
  $region24: #{smplx_cam_head_forward.3} parent=0 // pred_region
    _
  $region25: #{smplx_cam_head_forward.3} parent=0 // pred_fallthru
    _
  // Predicated region
  $region26: #{smplx_cam_head_forward.3} parent=0 // pred_check
    _
  $region27: #{smplx_cam_head_forward.3} parent=0 // pred_check_branch
    %341 = sbr.rel (0) target = $region29
  $region28: #{smplx_cam_head_forward.3} parent=0 // pred_region
    _
  $region29: #{smplx_cam_head_forward.3} parent=0 // pred_fallthru
    _
  // Predicated region
  $region30: #{smplx_cam_head_forward.3} parent=0 // pred_check
    _
  $region31: #{smplx_cam_head_forward.3} parent=0 // pred_check_branch
    %343 = sbr.rel (0) target = $region33
  $region32: #{smplx_cam_head_forward.3} parent=0 // pred_region
    _
  $region33: #{smplx_cam_head_forward.3} parent=0 // pred_fallthru
    _
  // Predicated region
  $region34: #{smplx_cam_head_forward.3} parent=0 // pred_check
    _
  $region35: #{smplx_cam_head_forward.3} parent=0 // pred_check_branch
    %345 = sbr.rel (0) target = $region37
  $region36: #{smplx_cam_head_forward.3} parent=0 // pred_region
    _
  $region37: #{smplx_cam_head_forward.3} parent=0 // pred_fallthru
    _
  // Predicated region
  $region38: #{smplx_cam_head_forward.3} parent=0 // pred_check
    _
  $region39: #{smplx_cam_head_forward.3} parent=0 // pred_check_branch
    %347 = sbr.rel (0) target = $region41
  $region40: #{smplx_cam_head_forward.3} parent=0 // pred_region
    _
  $region41: #{smplx_cam_head_forward.3} parent=0 // pred_fallthru
    _
  // Predicated region
  $region42: #{smplx_cam_head_forward.3} parent=0 // pred_check
    _
  $region43: #{smplx_cam_head_forward.3} parent=0 // pred_check_branch
    %349 = sbr.rel (0) target = $region45
  $region44: #{smplx_cam_head_forward.3} parent=0 // pred_region
    _
  $region45: #{smplx_cam_head_forward.3} parent=0 // pred_fallthru
    _

</llo_original>
